<compile_context>
chip_gen: v7x
topology: tpu7x:2x2x1
jax: 0.10.0
libtpu: 0.0.40
codegen_flags: <defaults>
</compile_context>

<pallas_src>
import functools

import jax
import jax.numpy as jnp
from jax.experimental import pallas as pl
from jax.experimental.pallas import tpu as pltpu

_LANE = 128        # lane width (fast axis) on v5e/v6e/v7x
_SUBLANE = 8       # f32 sublane count
_ACTION_PAD_BIAS = -1e30   # baked into padded b3 columns -> never win argmax


def _round_up(x, m):
    return (x + m - 1) // m * m


def _cdiv(a, b):
    return -(-a // b)


def _tpu_vmem_capacity_bytes():
    """Per-core VMEM capacity; conservative 64 MiB (v7x) fallback."""
    try:
        return int(pltpu.get_tpu_info().vmem_capacity_bytes)
    except Exception:
        return 64 << 20


# --------------------------------------------------------------------------
# Kernel
# --------------------------------------------------------------------------
def _dqn_mlp_kernel(x_ref, w1_ref, b1_ref, w2_ref, b2_ref, w3_ref, b3_ref,
                    *out_refs, emit_q):
    """Fused 3-layer MLP Q-network forward + argmax epilogue.

    MXU inputs are bf16; accumulation / bias / ReLU / argmax are f32.
    Padded action columns carry a large negative bias (baked into b3 during
    prepare_params), so no extra masking is needed before the argmax.
    """
    x = x_ref[...]                                               # (TB, OBSp) bf16

    h1 = jnp.dot(x, w1_ref[...], preferred_element_type=jnp.float32)
    h1 = jnp.maximum(h1 + b1_ref[...], 0.0)                      # f32 epilogue

    h2 = jnp.dot(h1.astype(w2_ref.dtype), w2_ref[...],
                 preferred_element_type=jnp.float32)
    h2 = jnp.maximum(h2 + b2_ref[...], 0.0)

    q = jnp.dot(h2.astype(w3_ref.dtype), w3_ref[...],
                preferred_element_type=jnp.float32)
    q = q + b3_ref[...]                                          # (TB, Ap) f32

    if emit_q:
        q_ref, act_ref = out_refs
        q_ref[...] = q
    else:
        (act_ref,) = out_refs

    # First-max argmax (ties -> smallest index, same as torch/jnp.argmax).
    # Reductions go to the XLU slot, which is otherwise idle here.
    col = jax.lax.broadcasted_iota(jnp.int32, q.shape, 1)
    max_q = jnp.max(q, axis=-1, keepdims=True)
    idx_or_big = jnp.where(q == max_q, col, q.shape[-1])
    act_ref[...] = jnp.min(idx_or_big, axis=-1, keepdims=True).astype(jnp.int32)


# --------------------------------------------------------------------------
# One-time parameter preparation (NOT on the rollout hot path)
# --------------------------------------------------------------------------
def _pad2(a, rows, cols, dtype, fill=0.0):
    out = jnp.full((rows, cols), fill, dtype)
    return out.at[: a.shape[0], : a.shape[1]].set(a.astype(dtype))


def prepare_params(params):
    """Lane-pad + cast weights to bf16 and biases to f32 once.

    Padded action columns of b3 get a large negative bias so the fused argmax
    can never select them (the mask is baked in; the kernel epilogue has no
    compare/select). Call this once per parameter update, not per forward.
    """
    w1, b1 = params["w1"], params["b1"]
    w2, b2 = params["w2"], params["b2"]
    w3, b3 = params["w3"], params["b3"]
    obs, hid = w1.shape
    act = w3.shape[1]
    obs_p = _round_up(obs, _LANE)
    hid_p = _round_up(hid, _LANE)
    act_p = _round_up(act, _LANE)

    prepared = dict(
        w1=_pad2(w1, obs_p, hid_p, jnp.bfloat16),
        w2=_pad2(w2, hid_p, hid_p, jnp.bfloat16),
        w3=_pad2(w3, hid_p, act_p, jnp.bfloat16),
        b1=_pad2(b1, 1, hid_p, jnp.float32),
        b2=_pad2(b2, 1, hid_p, jnp.float32),
        b3=_pad2(b3, 1, act_p, jnp.float32, fill=_ACTION_PAD_BIAS),
    )
    meta = dict(obs=obs, hidden=hid, actions=act,
                obs_p=obs_p, hidden_p=hid_p, actions_p=act_p)
    return prepared, meta


# --------------------------------------------------------------------------
# Tile selection / VMEM budgeting
# --------------------------------------------------------------------------
def _vmem_footprint(tb, obs_p, hid_p, act_p, resident_bytes, emit_q):
    fp = resident_bytes                       # single-buffered weights/biases
    fp += 2 * tb * obs_p * 2                  # x tile, bf16, double-buffered
    fp += 2 * tb * hid_p * 4                  # h1/h2 f32 intermediates
    fp += 2 * tb * 4                          # action tile, int32, dbl-buffered
    if emit_q:
        fp += 2 * tb * act_p * 4              # Q tile, f32, double-buffered
    return fp


def _select_tb(batch, obs_p, hid_p, act_p, resident_bytes, vmem_cap, emit_q):
    br = _round_up(max(batch, 1), _SUBLANE)
    big_vmem = vmem_cap >= (100 << 20)        # v5e/v6e: 128 MiB, single TC
    cap = 512 if big_vmem else 256
    tb = min(br, cap)
    if not big_vmem and br > 128:
        # v7x: 2 TensorCores/chip -> give the parallel batch grid >= 2
        # (roughly even) steps so both cores get work.
        tb = min(tb, _round_up(_cdiv(br, 2), _SUBLANE))
    # Shrink until everything fits in ~80% of the queried VMEM capacity.
    while tb > _SUBLANE and _vmem_footprint(
            tb, obs_p, hid_p, act_p, resident_bytes, emit_q) > 0.8 * vmem_cap:
        tb = max(_SUBLANE, _round_up(tb // 2, _SUBLANE))
    return tb


# --------------------------------------------------------------------------
# Hot-path wrapper
# --------------------------------------------------------------------------
def _dqn_call(x, prepared, meta, *, emit_q):
    B, obs = x.shape
    assert obs == meta["obs"], "obs dim mismatch with prepared params"
    obs_p, hid_p, act_p = meta["obs_p"], meta["hidden_p"], meta["actions_p"]

    w1, b1 = prepared["w1"], prepared["b1"]
    w2, b2 = prepared["w2"], prepared["b2"]
    w3, b3 = prepared["w3"], prepared["b3"]

    resident_bytes = ((w1.size + w2.size + w3.size) * 2
                      + (b1.size + b2.size + b3.size) * 4)
    vmem_cap = _tpu_vmem_capacity_bytes()
    TB = _select_tb(B, obs_p, hid_p, act_p, resident_bytes, vmem_cap, emit_q)
    Bp = _round_up(max(B, TB), TB)
    grid = (Bp // TB,)

    # Hot-path prep: ONLY the activations are padded / cast per call.
    x_p = jnp.zeros((Bp, obs_p), jnp.bfloat16).at[:B, :obs].set(
        x.astype(jnp.bfloat16))

    need = _vmem_footprint(TB, obs_p, hid_p, act_p, resident_bytes, emit_q)
    vmem_limit = int(min(max(2 * need, 32 << 20), int(0.9 * vmem_cap)))

    flops = 2 * Bp * (obs_p * hid_p + hid_p * hid_p + hid_p * act_p)
    bytes_accessed = (
        x_p.size * 2
        + (w1.size + w2.size + w3.size) * 2
        + (b1.size + b2.size + b3.size) * 4
        + Bp * 4 + (Bp * act_p * 4 if emit_q else 0))

    if emit_q:
        out_shape = (jax.ShapeDtypeStruct((Bp, act_p), jnp.float32),
                     jax.ShapeDtypeStruct((Bp, 1), jnp.int32))
        out_specs = (pl.BlockSpec((TB, act_p), lambda i: (i, 0)),
                     pl.BlockSpec((TB, 1), lambda i: (i, 0)))
    else:
        out_shape = jax.ShapeDtypeStruct((Bp, 1), jnp.int32)
        out_specs = pl.BlockSpec((TB, 1), lambda i: (i, 0))

    kernel = functools.partial(_dqn_mlp_kernel, emit_q=emit_q)

    def run(single_buffer_weights):
        if single_buffer_weights:
            # index_map is constant across the grid -> one VMEM copy suffices.
            resident = lambda a: pl.BlockSpec(
                a.shape, lambda i: (0, 0), pipeline_mode=pl.Buffered(1))
        else:
            resident = lambda a: pl.BlockSpec(a.shape, lambda i: (0, 0))
        return pl.pallas_call(
            kernel,
            out_shape=out_shape,
            grid=grid,
            in_specs=[
                pl.BlockSpec((TB, obs_p), lambda i: (i, 0)),      # activations
                resident(w1), resident(b1),
                resident(w2), resident(b2),
                resident(w3), resident(b3),
            ],
            out_specs=out_specs,
            compiler_params=pltpu.CompilerParams(
                dimension_semantics=("parallel",),                # 2 TCs on v7x
                vmem_limit_bytes=vmem_limit),
            cost_estimate=pl.CostEstimate(
                flops=int(flops), transcendentals=0,
                bytes_accessed=int(bytes_accessed)),
        )(x_p, w1, b1, w2, b2, w3, b3)

    try:
        return run(single_buffer_weights=True)
    except Exception:
        # pl.Buffered(1) plumbing differs across jax versions; fall back to the
        # default double-buffered resident weights (numerically identical).
        return run(single_buffer_weights=False)


def dqn_forward_and_action(x, prepared, meta):
    """Q-network forward + fused argmax in one Pallas kernel."""
    q_pad, act_pad = _dqn_call(x, prepared, meta, emit_q=True)
    B, A = x.shape[0], meta["actions"]
    return q_pad[:B, :A], act_pad[:B, 0]


def dqn_forward(x, prepared, meta):
    """Matches DeepQLearningAgent.forward(x) -> Q-values (f32)."""
    q, _ = dqn_forward_and_action(x, prepared, meta)
    return q


def get_action(x, prepared, meta):
    """Matches DeepQLearningAgent.get_action(x) -> argmax action.

    Action-only kernel variant: no (Bp, Ap) f32 Q writeback at all.
    """
    act_pad = _dqn_call(x, prepared, meta, emit_q=False)
    return act_pad[: x.shape[0], 0]


# --------------------------------------------------------------------------
# Synthetic init (PyTorch-Linear-like scaling)
# --------------------------------------------------------------------------
def init_params(key, obs_dim, hidden, n_actions):
    ks = jax.random.split(key, 6)

    def lin(kw, kb, fan_in, fan_out):
        bound = 1.0 / jnp.sqrt(fan_in)
        w = jax.random.uniform(kw, (fan_in, fan_out), jnp.float32,
                               -bound, bound)
        b = jax.random.uniform(kb, (1, fan_out), jnp.float32, -bound, bound)
        return w, b

    w1, b1 = lin(ks[0], ks[1], obs_dim, hidden)
    w2, b2 = lin(ks[2], ks[3], hidden, hidden)
    w3, b3 = lin(ks[4], ks[5], hidden, n_actions)
    return dict(w1=w1, b1=b1, w2=w2, b2=b2, w3=w3, b3=b3)


if __name__ == "__main__":
    key = jax.random.PRNGKey(0)
    k_obs, k_par = jax.random.split(key)

    B, OBS, HID, ACT = 8, 16, 32, 4
    x = jax.random.normal(k_obs, (B, OBS), jnp.float32)
    params = init_params(k_par, OBS, HID, ACT)

    # One-time prep (off the hot path): pad + bf16-cast weights, bake argmax mask.
    prepared, meta = prepare_params(params)
    jax.block_until_ready(prepared)

    q_vals, actions = dqn_forward_and_action(x, prepared, meta)
    actions_only = get_action(x, prepared, meta)        # no-Q fast path
    jax.block_until_ready((q_vals, actions, actions_only))

    # Reference check against plain-JAX f32 forward (kernel uses bf16 MXU
    # operands with f32 accumulation, so compare with relaxed tolerance).
    h1 = jnp.maximum(x @ params["w1"] + params["b1"], 0.0)
    h2 = jnp.maximum(h1 @ params["w2"] + params["b2"], 0.0)
    q_ref = h2 @ params["w3"] + params["b3"]

    assert q_vals.shape == (B, ACT)
    assert actions.shape == (B,)
    assert jnp.allclose(q_vals, q_ref, atol=2e-2, rtol=2e-2)
    # fused argmax must agree with argmax over the kernel's own Q values
    assert jnp.array_equal(actions, jnp.argmax(q_vals, axis=-1))
    # the action-only fast path must agree with the fused forward+action path
    assert jnp.array_equal(actions_only, actions)

    print("KERNEL_OK")
</pallas_src>

<mosaic_0001>
module attributes {stable_mosaic.version = 11 : i64} {
  func.func @_dqn_mlp_kernel(%arg0: i32, %arg1: memref<8x128xbf16, #tpu.memory_space<vmem>>, %arg2: memref<128x128xbf16, #tpu.memory_space<vmem>>, %arg3: memref<1x128xf32, #tpu.memory_space<vmem>>, %arg4: memref<128x128xbf16, #tpu.memory_space<vmem>>, %arg5: memref<1x128xf32, #tpu.memory_space<vmem>>, %arg6: memref<128x128xbf16, #tpu.memory_space<vmem>>, %arg7: memref<1x128xf32, #tpu.memory_space<vmem>>, %arg8: memref<8x128xf32, #tpu.memory_space<vmem>>, %arg9: memref<8x1xi32, #tpu.memory_space<vmem>>) attributes {dimension_semantics = [#tpu.dimension_semantics<parallel>], iteration_bounds = array<i64: 1>, scalar_prefetch = 0 : i64, scratch_operands = 0 : i64, tpu.core_type = #tpu.core_type<tc>, window_params = [{transform_indices = @transform_0, window_bounds = array<i64: 8, 128>}, {pipeline_mode = #tpu.pipeline_mode<synchronous>, transform_indices = @transform_1, window_bounds = array<i64: 128, 128>}, {pipeline_mode = #tpu.pipeline_mode<synchronous>, transform_indices = @transform_2, window_bounds = array<i64: 1, 128>}, {pipeline_mode = #tpu.pipeline_mode<synchronous>, transform_indices = @transform_3, window_bounds = array<i64: 128, 128>}, {pipeline_mode = #tpu.pipeline_mode<synchronous>, transform_indices = @transform_4, window_bounds = array<i64: 1, 128>}, {pipeline_mode = #tpu.pipeline_mode<synchronous>, transform_indices = @transform_5, window_bounds = array<i64: 128, 128>}, {pipeline_mode = #tpu.pipeline_mode<synchronous>, transform_indices = @transform_6, window_bounds = array<i64: 1, 128>}, {transform_indices = @transform_7, window_bounds = array<i64: 8, 128>}, {transform_indices = @transform_8, window_bounds = array<i64: 8, 1>}]} {
    %c0 = arith.constant 0 : index
    %c0_0 = arith.constant 0 : index
    %0 = vector.load %arg1[%c0, %c0_0] : memref<8x128xbf16, #tpu.memory_space<vmem>>, vector<8x128xbf16>
    %c0_1 = arith.constant 0 : index
    %c0_2 = arith.constant 0 : index
    %1 = vector.load %arg2[%c0_1, %c0_2] : memref<128x128xbf16, #tpu.memory_space<vmem>>, vector<128x128xbf16>
    %cst = arith.constant dense<0.000000e+00> : vector<8x128xf32>
    %2 = tpu.matmul %0, %1, %cst {dimension_numbers = #tpu.dot_dimension_numbers<[1], [0], [0], [1], [0, 0, 1, 1], [], []>} : vector<8x128xbf16>, vector<128x128xbf16>, vector<8x128xf32> -> vector<8x128xf32>
    %c0_3 = arith.constant 0 : index
    %c0_4 = arith.constant 0 : index
    %3 = vector.load %arg3[%c0_3, %c0_4] : memref<1x128xf32, #tpu.memory_space<vmem>>, vector<1x128xf32>
    %4 = vector.broadcast %3 : vector<1x128xf32> to vector<8x128xf32>
    %5 = arith.addf %2, %4 : vector<8x128xf32>
    %cst_5 = arith.constant 0.000000e+00 : f32
    %6 = vector.broadcast %cst_5 : f32 to vector<8x128xf32>
    %7 = arith.maximumf %5, %6 : vector<8x128xf32>
    %8 = arith.truncf %7 : vector<8x128xf32> to vector<8x128xbf16>
    %c0_6 = arith.constant 0 : index
    %c0_7 = arith.constant 0 : index
    %9 = vector.load %arg4[%c0_6, %c0_7] : memref<128x128xbf16, #tpu.memory_space<vmem>>, vector<128x128xbf16>
    %cst_8 = arith.constant dense<0.000000e+00> : vector<8x128xf32>
    %10 = tpu.matmul %8, %9, %cst_8 {dimension_numbers = #tpu.dot_dimension_numbers<[1], [0], [0], [1], [0, 0, 1, 1], [], []>} : vector<8x128xbf16>, vector<128x128xbf16>, vector<8x128xf32> -> vector<8x128xf32>
    %c0_9 = arith.constant 0 : index
    %c0_10 = arith.constant 0 : index
    %11 = vector.load %arg5[%c0_9, %c0_10] : memref<1x128xf32, #tpu.memory_space<vmem>>, vector<1x128xf32>
    %12 = vector.broadcast %11 : vector<1x128xf32> to vector<8x128xf32>
    %13 = arith.addf %10, %12 : vector<8x128xf32>
    %cst_11 = arith.constant 0.000000e+00 : f32
    %14 = vector.broadcast %cst_11 : f32 to vector<8x128xf32>
    %15 = arith.maximumf %13, %14 : vector<8x128xf32>
    %16 = arith.truncf %15 : vector<8x128xf32> to vector<8x128xbf16>
    %c0_12 = arith.constant 0 : index
    %c0_13 = arith.constant 0 : index
    %17 = vector.load %arg6[%c0_12, %c0_13] : memref<128x128xbf16, #tpu.memory_space<vmem>>, vector<128x128xbf16>
    %cst_14 = arith.constant dense<0.000000e+00> : vector<8x128xf32>
    %18 = tpu.matmul %16, %17, %cst_14 {dimension_numbers = #tpu.dot_dimension_numbers<[1], [0], [0], [1], [0, 0, 1, 1], [], []>} : vector<8x128xbf16>, vector<128x128xbf16>, vector<8x128xf32> -> vector<8x128xf32>
    %c0_15 = arith.constant 0 : index
    %c0_16 = arith.constant 0 : index
    %19 = vector.load %arg7[%c0_15, %c0_16] : memref<1x128xf32, #tpu.memory_space<vmem>>, vector<1x128xf32>
    %20 = vector.broadcast %19 : vector<1x128xf32> to vector<8x128xf32>
    %21 = arith.addf %18, %20 : vector<8x128xf32>
    %c0_17 = arith.constant 0 : index
    %c0_18 = arith.constant 0 : index
    %22 = vector.load %arg8[%c0_17, %c0_18] : memref<8x128xf32, #tpu.memory_space<vmem>>, vector<8x128xf32>
    tpu.vector_store %arg8[%c0_17, %c0_18], %21 {strides = array<i32>} : memref<8x128xf32, #tpu.memory_space<vmem>>, vector<8x128xf32>,
    %23 = tpu.iota {dimensions = array<i32: 1>} : vector<8x128xi32>
    %cst_19 = arith.constant dense<0xFF800000> : vector<8xf32>
    %24 = vector.multi_reduction <maximumf>, %21, %cst_19 [1] : vector<8x128xf32> to vector<8xf32>
    %25 = vector.shape_cast %24 : vector<8xf32> to vector<8x1xf32>
    %26 = vector.broadcast %25 : vector<8x1xf32> to vector<8x128xf32>
    %27 = arith.cmpf oeq, %21, %26 : vector<8x128xf32>
    %c128_i32 = arith.constant 128 : i32
    %28 = vector.broadcast %c128_i32 : i32 to vector<8x128xi32>
    %29 = arith.select %27, %23, %28 : vector<8x128xi1>, vector<8x128xi32>
    %cst_20 = arith.constant dense<2147483647> : vector<8xi32>
    %30 = vector.multi_reduction <minsi>, %29, %cst_20 [1] : vector<8x128xi32> to vector<8xi32>
    %31 = vector.shape_cast %30 : vector<8xi32> to vector<8x1xi32>
    %c0_21 = arith.constant 0 : index
    %c0_22 = arith.constant 0 : index
    %32 = vector.load %arg9[%c0_21, %c0_22] : memref<8x1xi32, #tpu.memory_space<vmem>>, vector<8x1xi32>
    tpu.vector_store %arg9[%c0_21, %c0_22], %31 {strides = array<i32>} : memref<8x1xi32, #tpu.memory_space<vmem>>, vector<8x1xi32>,
    return
  }
  func.func @transform_0(%arg0: i32) -> (i32, i32) {
    %c0_i32 = arith.constant 0 : i32
    %c0_i32_0 = arith.constant 0 : i32
    return %arg0, %c0_i32 : i32, i32
  }
  func.func @transform_1(%arg0: i32) -> (i32, i32) {
    %c0_i32 = arith.constant 0 : i32
    %c0_i32_0 = arith.constant 0 : i32
    %c0_i32_1 = arith.constant 0 : i32
    return %c0_i32, %c0_i32_0 : i32, i32
  }
  func.func @transform_2(%arg0: i32) -> (i32, i32) {
    %c0_i32 = arith.constant 0 : i32
    %c0_i32_0 = arith.constant 0 : i32
    %c0_i32_1 = arith.constant 0 : i32
    return %c0_i32, %c0_i32_0 : i32, i32
  }
  func.func @transform_3(%arg0: i32) -> (i32, i32) {
    %c0_i32 = arith.constant 0 : i32
    %c0_i32_0 = arith.constant 0 : i32
    %c0_i32_1 = arith.constant 0 : i32
    return %c0_i32, %c0_i32_0 : i32, i32
  }
  func.func @transform_4(%arg0: i32) -> (i32, i32) {
    %c0_i32 = arith.constant 0 : i32
    %c0_i32_0 = arith.constant 0 : i32
    %c0_i32_1 = arith.constant 0 : i32
    return %c0_i32, %c0_i32_0 : i32, i32
  }
  func.func @transform_5(%arg0: i32) -> (i32, i32) {
    %c0_i32 = arith.constant 0 : i32
    %c0_i32_0 = arith.constant 0 : i32
    %c0_i32_1 = arith.constant 0 : i32
    return %c0_i32, %c0_i32_0 : i32, i32
  }
  func.func @transform_6(%arg0: i32) -> (i32, i32) {
    %c0_i32 = arith.constant 0 : i32
    %c0_i32_0 = arith.constant 0 : i32
    %c0_i32_1 = arith.constant 0 : i32
    return %c0_i32, %c0_i32_0 : i32, i32
  }
  func.func @transform_7(%arg0: i32) -> (i32, i32) {
    %c0_i32 = arith.constant 0 : i32
    %c0_i32_0 = arith.constant 0 : i32
    return %arg0, %c0_i32 : i32, i32
  }
  func.func @transform_8(%arg0: i32) -> (i32, i32) {
    %c0_i32 = arith.constant 0 : i32
    %c0_i32_0 = arith.constant 0 : i32
    return %arg0, %c0_i32 : i32, i32
  }
}

module attributes {stable_mosaic.version = 11 : i64} {
  func.func @_dqn_mlp_kernel(%arg0: i32, %arg1: memref<8x128xbf16, #tpu.memory_space<vmem>>, %arg2: memref<128x128xbf16, #tpu.memory_space<vmem>>, %arg3: memref<1x128xf32, #tpu.memory_space<vmem>>, %arg4: memref<128x128xbf16, #tpu.memory_space<vmem>>, %arg5: memref<1x128xf32, #tpu.memory_space<vmem>>, %arg6: memref<128x128xbf16, #tpu.memory_space<vmem>>, %arg7: memref<1x128xf32, #tpu.memory_space<vmem>>, %arg8: memref<8x128xf32, #tpu.memory_space<vmem>>, %arg9: memref<8x1xi32, #tpu.memory_space<vmem>>) attributes {dimension_semantics = [#tpu.dimension_semantics<parallel>], iteration_bounds = array<i64: 1>, scalar_prefetch = 0 : i64, scratch_operands = 0 : i64, tpu.core_type = #tpu.core_type<tc>, window_params = [{transform_indices = @transform_0, window_bounds = array<i64: 8, 128>}, {pipeline_mode = #tpu.pipeline_mode<synchronous>, transform_indices = @transform_1, window_bounds = array<i64: 128, 128>}, {pipeline_mode = #tpu.pipeline_mode<synchronous>, transform_indices = @transform_2, window_bounds = array<i64: 1, 128>}, {pipeline_mode = #tpu.pipeline_mode<synchronous>, transform_indices = @transform_3, window_bounds = array<i64: 128, 128>}, {pipeline_mode = #tpu.pipeline_mode<synchronous>, transform_indices = @transform_4, window_bounds = array<i64: 1, 128>}, {pipeline_mode = #tpu.pipeline_mode<synchronous>, transform_indices = @transform_5, window_bounds = array<i64: 128, 128>}, {pipeline_mode = #tpu.pipeline_mode<synchronous>, transform_indices = @transform_6, window_bounds = array<i64: 1, 128>}, {transform_indices = @transform_7, window_bounds = array<i64: 8, 128>}, {transform_indices = @transform_8, window_bounds = array<i64: 8, 1>}]} {
    %c0 = arith.constant 0 : index
    %c0_0 = arith.constant 0 : index
    %0 = vector.load %arg1[%c0, %c0_0] : memref<8x128xbf16, #tpu.memory_space<vmem>>, vector<8x128xbf16>
    %c0_1 = arith.constant 0 : index
    %c0_2 = arith.constant 0 : index
    %1 = vector.load %arg2[%c0_1, %c0_2] : memref<128x128xbf16, #tpu.memory_space<vmem>>, vector<128x128xbf16>
    %cst = arith.constant dense<0.000000e+00> : vector<8x128xf32>
    %2 = tpu.matmul %0, %1, %cst {dimension_numbers = #tpu.dot_dimension_numbers<[1], [0], [0], [1], [0, 0, 1, 1], [], []>} : vector<8x128xbf16>, vector<128x128xbf16>, vector<8x128xf32> -> vector<8x128xf32>
    %c0_3 = arith.constant 0 : index
    %c0_4 = arith.constant 0 : index
    %3 = vector.load %arg3[%c0_3, %c0_4] : memref<1x128xf32, #tpu.memory_space<vmem>>, vector<1x128xf32>
    %4 = vector.broadcast %3 : vector<1x128xf32> to vector<8x128xf32>
    %5 = arith.addf %2, %4 : vector<8x128xf32>
    %cst_5 = arith.constant 0.000000e+00 : f32
    %6 = vector.broadcast %cst_5 : f32 to vector<8x128xf32>
    %7 = arith.maximumf %5, %6 : vector<8x128xf32>
    %8 = arith.truncf %7 : vector<8x128xf32> to vector<8x128xbf16>
    %c0_6 = arith.constant 0 : index
    %c0_7 = arith.constant 0 : index
    %9 = vector.load %arg4[%c0_6, %c0_7] : memref<128x128xbf16, #tpu.memory_space<vmem>>, vector<128x128xbf16>
    %cst_8 = arith.constant dense<0.000000e+00> : vector<8x128xf32>
    %10 = tpu.matmul %8, %9, %cst_8 {dimension_numbers = #tpu.dot_dimension_numbers<[1], [0], [0], [1], [0, 0, 1, 1], [], []>} : vector<8x128xbf16>, vector<128x128xbf16>, vector<8x128xf32> -> vector<8x128xf32>
    %c0_9 = arith.constant 0 : index
    %c0_10 = arith.constant 0 : index
    %11 = vector.load %arg5[%c0_9, %c0_10] : memref<1x128xf32, #tpu.memory_space<vmem>>, vector<1x128xf32>
    %12 = vector.broadcast %11 : vector<1x128xf32> to vector<8x128xf32>
    %13 = arith.addf %10, %12 : vector<8x128xf32>
    %cst_11 = arith.constant 0.000000e+00 : f32
    %14 = vector.broadcast %cst_11 : f32 to vector<8x128xf32>
    %15 = arith.maximumf %13, %14 : vector<8x128xf32>
    %16 = arith.truncf %15 : vector<8x128xf32> to vector<8x128xbf16>
    %c0_12 = arith.constant 0 : index
    %c0_13 = arith.constant 0 : index
    %17 = vector.load %arg6[%c0_12, %c0_13] : memref<128x128xbf16, #tpu.memory_space<vmem>>, vector<128x128xbf16>
    %cst_14 = arith.constant dense<0.000000e+00> : vector<8x128xf32>
    %18 = tpu.matmul %16, %17, %cst_14 {dimension_numbers = #tpu.dot_dimension_numbers<[1], [0], [0], [1], [0, 0, 1, 1], [], []>} : vector<8x128xbf16>, vector<128x128xbf16>, vector<8x128xf32> -> vector<8x128xf32>
    %c0_15 = arith.constant 0 : index
    %c0_16 = arith.constant 0 : index
    %19 = vector.load %arg7[%c0_15, %c0_16] : memref<1x128xf32, #tpu.memory_space<vmem>>, vector<1x128xf32>
    %20 = vector.broadcast %19 : vector<1x128xf32> to vector<8x128xf32>
    %21 = arith.addf %18, %20 : vector<8x128xf32>
    %c0_17 = arith.constant 0 : index
    %c0_18 = arith.constant 0 : index
    %22 = vector.load %arg8[%c0_17, %c0_18] : memref<8x128xf32, #tpu.memory_space<vmem>>, vector<8x128xf32>
    tpu.vector_store %arg8[%c0_17, %c0_18], %21 {strides = array<i32>} : memref<8x128xf32, #tpu.memory_space<vmem>>, vector<8x128xf32>,
    %23 = tpu.iota {dimensions = array<i32: 1>} : vector<8x128xi32>
    %cst_19 = arith.constant dense<0xFF800000> : vector<8xf32>
    %24 = vector.multi_reduction <maximumf>, %21, %cst_19 [1] : vector<8x128xf32> to vector<8xf32>
    %25 = vector.shape_cast %24 : vector<8xf32> to vector<8x1xf32>
    %26 = vector.broadcast %25 : vector<8x1xf32> to vector<8x128xf32>
    %27 = arith.cmpf oeq, %21, %26 : vector<8x128xf32>
    %c128_i32 = arith.constant 128 : i32
    %28 = vector.broadcast %c128_i32 : i32 to vector<8x128xi32>
    %29 = arith.select %27, %23, %28 : vector<8x128xi1>, vector<8x128xi32>
    %cst_20 = arith.constant dense<2147483647> : vector<8xi32>
    %30 = vector.multi_reduction <minsi>, %29, %cst_20 [1] : vector<8x128xi32> to vector<8xi32>
    %31 = vector.shape_cast %30 : vector<8xi32> to vector<8x1xi32>
    %c0_21 = arith.constant 0 : index
    %c0_22 = arith.constant 0 : index
    %32 = vector.load %arg9[%c0_21, %c0_22] : memref<8x1xi32, #tpu.memory_space<vmem>>, vector<8x1xi32>
    tpu.vector_store %arg9[%c0_21, %c0_22], %31 {strides = array<i32>} : memref<8x1xi32, #tpu.memory_space<vmem>>, vector<8x1xi32>,
    return
  }
  func.func @transform_0(%arg0: i32) -> (i32, i32) {
    %c0_i32 = arith.constant 0 : i32
    %c0_i32_0 = arith.constant 0 : i32
    return %arg0, %c0_i32 : i32, i32
  }
  func.func @transform_1(%arg0: i32) -> (i32, i32) {
    %c0_i32 = arith.constant 0 : i32
    %c0_i32_0 = arith.constant 0 : i32
    %c0_i32_1 = arith.constant 0 : i32
    return %c0_i32, %c0_i32_0 : i32, i32
  }
  func.func @transform_2(%arg0: i32) -> (i32, i32) {
    %c0_i32 = arith.constant 0 : i32
    %c0_i32_0 = arith.constant 0 : i32
    %c0_i32_1 = arith.constant 0 : i32
    return %c0_i32, %c0_i32_0 : i32, i32
  }
  func.func @transform_3(%arg0: i32) -> (i32, i32) {
    %c0_i32 = arith.constant 0 : i32
    %c0_i32_0 = arith.constant 0 : i32
    %c0_i32_1 = arith.constant 0 : i32
    return %c0_i32, %c0_i32_0 : i32, i32
  }
  func.func @transform_4(%arg0: i32) -> (i32, i32) {
    %c0_i32 = arith.constant 0 : i32
    %c0_i32_0 = arith.constant 0 : i32
    %c0_i32_1 = arith.constant 0 : i32
    return %c0_i32, %c0_i32_0 : i32, i32
  }
  func.func @transform_5(%arg0: i32) -> (i32, i32) {
    %c0_i32 = arith.constant 0 : i32
    %c0_i32_0 = arith.constant 0 : i32
    %c0_i32_1 = arith.constant 0 : i32
    return %c0_i32, %c0_i32_0 : i32, i32
  }
  func.func @transform_6(%arg0: i32) -> (i32, i32) {
    %c0_i32 = arith.constant 0 : i32
    %c0_i32_0 = arith.constant 0 : i32
    %c0_i32_1 = arith.constant 0 : i32
    return %c0_i32, %c0_i32_0 : i32, i32
  }
  func.func @transform_7(%arg0: i32) -> (i32, i32) {
    %c0_i32 = arith.constant 0 : i32
    %c0_i32_0 = arith.constant 0 : i32
    return %arg0, %c0_i32 : i32, i32
  }
  func.func @transform_8(%arg0: i32) -> (i32, i32) {
    %c0_i32 = arith.constant 0 : i32
    %c0_i32_0 = arith.constant 0 : i32
    return %arg0, %c0_i32 : i32, i32
  }
}

</mosaic_0001>

<llo_original>
// kernel: tpu_custom_call.1
$region0: #{tpu_custom_call.1}
  #allocation0 [shape = 'u32[]', space=smem, size = 0x4, offset = 0x4, fixed_abs, tag = 'smem constant byte address 0x4 - core index']
  #allocation1 [shape = 'u32[144,128]{1,0:T(1,128)}', space=vmem, size = 0x12000, scoped, tag = 'internal scratch']
  %s0 = inlined_call_operand.hbm [shape: bf16[8,128], index: 0, kind: input, shape index: {}]
  %s1 = inlined_call_operand.hbm [shape: bf16[128,128], index: 1, kind: input, shape index: {}]
  %s2 = inlined_call_operand.vmem [shape: f32[1,128], index: 2, kind: input, shape index: {}]
  %s3 = inlined_call_operand.hbm [shape: bf16[128,128], index: 3, kind: input, shape index: {}]
  %s4 = inlined_call_operand.vmem [shape: f32[1,128], index: 4, kind: input, shape index: {}]
  %s5 = inlined_call_operand.hbm [shape: bf16[128,128], index: 5, kind: input, shape index: {}]
  %s6 = inlined_call_operand.vmem [shape: f32[1,128], index: 6, kind: input, shape index: {}]
  %s7 = inlined_call_operand.hbm [shape: f32[8,128], index: 7, kind: output, shape index: {0}]
  %s8 = inlined_call_operand.vmem [shape: s32[8,1], index: 8, kind: output, shape index: {1}]
  %9 = xla_tuple %s7, %s8
  %s10 = sld [smem:[#allocation0]]
  $region62: #{tpu_custom_call.1} parent=0
    _
  %s12 = ssub.s32 1, %s10
  %s13 = scalar_select 0, %s12, %s10
  $region1: #{tpu_custom_call.1} parent=0
    #allocation2 [shape = 'u8[2048]{0}', space=vmem, size = 0x800, scoped, tag = 'input window, operand 0, single buffered']
    #allocation3 [shape = 's32[1]{0}', space=sflag, size = 0x4, scoped, tag = 'scoped memory for tpu_custom_call.1']
    #allocation4 [shape = 's32[1]{0}', space=sflag, size = 0x4, scoped, tag = 'scoped memory for tpu_custom_call.1']
    #allocation5 [shape = 'u8[32768]{0}', space=vmem, size = 0x8000, scoped, tag = 'input window, operand 1, single buffered']
    #allocation6 [shape = 's32[1]{0}', space=sflag, size = 0x4, scoped, tag = 'scoped memory for tpu_custom_call.1']
    #allocation7 [shape = 'u8[32768]{0}', space=vmem, size = 0x8000, scoped, tag = 'input window, operand 3, single buffered']
    #allocation8 [shape = 'u8[32768]{0}', space=vmem, size = 0x8000, scoped, tag = 'input window, operand 5, single buffered']
    #allocation9 [shape = 's32[1]{0}', space=sflag, size = 0x4, scoped, tag = 'scoped memory for tpu_custom_call.1']
    #allocation10 [shape = 'u8[4096]{0}', space=vmem, size = 0x1000, scoped, tag = 'output window, operand 0, single buffered']
    %14 = vsyncpa [#allocation3], 0
    %15 = vsyncpa [#allocation6], 0
    %16 = vsyncpa [#allocation9], 0
    %17 = vsyncpa [#allocation4], 0
    // Predicated region
    $region2: #{tpu_custom_call.1} parent=1 // pred_check
      _
    $region3: #{tpu_custom_call.1} parent=1 // pred_check_branch
      %19 = sbr.rel (0) target = $region5
    $region4: #{tpu_custom_call.1} parent=1 // pred_region
      %s21 = ssub.s32 64, 64
      %22 = vsyncadd [#allocation3], %s21
      %s24 = sshll.u32 [#allocation2], 4
      %s25 = int_to_ptr.vmem [resolvable:$true] %s24
      %27 = dma.hbm_to_vmem [thread:$0]  %s0, 64, %s25, [#allocation3]
    $region5: #{tpu_custom_call.1} parent=1 // pred_fallthru
      _
    // Predicated region
    $region6: #{tpu_custom_call.1} parent=1 // pred_check
      _
    $region7: #{tpu_custom_call.1} parent=1 // pred_check_branch
      %29 = sbr.rel (0) target = $region9
    $region8: #{tpu_custom_call.1} parent=1 // pred_region
      %s31 = ssub.s32 1024, 1024
      %32 = vsyncadd [#allocation6], %s31
      %s33 = sshll.u32 [#allocation5], 4
      %s34 = int_to_ptr.vmem [resolvable:$true] %s33
      %39 = dma.hbm_to_vmem [thread:$0]  %s1, 1024, %s34, [#allocation6], 64, 64, 4
    $region9: #{tpu_custom_call.1} parent=1 // pred_fallthru
      _
    // Predicated region
    $region10: #{tpu_custom_call.1} parent=1 // pred_check
      _
    $region11: #{tpu_custom_call.1} parent=1 // pred_check_branch
      %41 = sbr.rel (0) target = $region13
    $region12: #{tpu_custom_call.1} parent=1 // pred_region
      _
    $region13: #{tpu_custom_call.1} parent=1 // pred_fallthru
      _
    // Predicated region
    $region14: #{tpu_custom_call.1} parent=1 // pred_check
      _
    $region15: #{tpu_custom_call.1} parent=1 // pred_check_branch
      %43 = sbr.rel (0) target = $region17
    $region16: #{tpu_custom_call.1} parent=1 // pred_region
      %s45 = ssub.s32 1024, 1024
      %46 = vsyncadd [#allocation6], %s45
      %s47 = sshll.u32 [#allocation7], 4
      %s48 = int_to_ptr.vmem [resolvable:$true] %s47
      %53 = dma.hbm_to_vmem [thread:$0]  %s3, 1024, %s48, [#allocation6], 64, 64, 4
    $region17: #{tpu_custom_call.1} parent=1 // pred_fallthru
      _
    // Predicated region
    $region18: #{tpu_custom_call.1} parent=1 // pred_check
      _
    $region19: #{tpu_custom_call.1} parent=1 // pred_check_branch
      %55 = sbr.rel (0) target = $region21
    $region20: #{tpu_custom_call.1} parent=1 // pred_region
      _
    $region21: #{tpu_custom_call.1} parent=1 // pred_fallthru
      _
    // Predicated region
    $region22: #{tpu_custom_call.1} parent=1 // pred_check
      _
    $region23: #{tpu_custom_call.1} parent=1 // pred_check_branch
      %57 = sbr.rel (0) target = $region25
    $region24: #{tpu_custom_call.1} parent=1 // pred_region
      %s59 = ssub.s32 1024, 1024
      %60 = vsyncadd [#allocation9], %s59
      %s61 = sshll.u32 [#allocation8], 4
      %s62 = int_to_ptr.vmem [resolvable:$true] %s61
      %67 = dma.hbm_to_vmem [thread:$0]  %s5, 1024, %s62, [#allocation9], 64, 64, 4
    $region25: #{tpu_custom_call.1} parent=1 // pred_fallthru
      _
    // Predicated region
    $region26: #{tpu_custom_call.1} parent=1 // pred_check
      _
    $region27: #{tpu_custom_call.1} parent=1 // pred_check_branch
      %69 = sbr.rel (0) target = $region29
    $region28: #{tpu_custom_call.1} parent=1 // pred_region
      _
    $region29: #{tpu_custom_call.1} parent=1 // pred_fallthru
      _
    // Predicated region
    $region30: #{tpu_custom_call.1} parent=1 // pred_check
      _
    $region31: #{tpu_custom_call.1} parent=1 // pred_check_branch
      %71 = sbr.rel (0) target = $region33
    $region32: #{tpu_custom_call.1} parent=1 // pred_region
      %72 = dma.done [#allocation3], 64
    $region33: #{tpu_custom_call.1} parent=1 // pred_fallthru
      _
    // Predicated region
    $region34: #{tpu_custom_call.1} parent=1 // pred_check
      _
    $region35: #{tpu_custom_call.1} parent=1 // pred_check_branch
      %74 = sbr.rel (0) target = $region37
    $region36: #{tpu_custom_call.1} parent=1 // pred_region
      %75 = dma.done [#allocation6], 1024
    $region37: #{tpu_custom_call.1} parent=1 // pred_fallthru
      _
    // Predicated region
    $region38: #{tpu_custom_call.1} parent=1 // pred_check
      _
    $region39: #{tpu_custom_call.1} parent=1 // pred_check_branch
      %77 = sbr.rel (0) target = $region41
    $region40: #{tpu_custom_call.1} parent=1 // pred_region
      %78 = dma.done [#allocation6], 1024
    $region41: #{tpu_custom_call.1} parent=1 // pred_fallthru
      _
    // Predicated region
    $region42: #{tpu_custom_call.1} parent=1 // pred_check
      _
    $region43: #{tpu_custom_call.1} parent=1 // pred_check_branch
      %80 = sbr.rel (0) target = $region45
    $region44: #{tpu_custom_call.1} parent=1 // pred_region
      %81 = dma.done [#allocation9], 1024
    $region45: #{tpu_custom_call.1} parent=1 // pred_fallthru
      _
    %v83 = vld [vmem:[#allocation2] sm:$0xf]
    %v84 = vld [vmem:[#allocation5] sm:$0xf]
    %v85 = vld [vmem:[#allocation5 + $0x4] sm:$0xf]
    %v86 = vld [vmem:[#allocation5 + $0x8] sm:$0xf]
    %v87 = vld [vmem:[#allocation5 + $0xc] sm:$0xf]
    %v88 = vld [vmem:[#allocation5 + $0x10] sm:$0xf]
    %v89 = vld [vmem:[#allocation5 + $0x14] sm:$0xf]
    %v90 = vld [vmem:[#allocation5 + $0x18] sm:$0xf]
    %v91 = vld [vmem:[#allocation5 + $0x1c] sm:$0xf]
    %v92 = vld [vmem:[#allocation5 + $0x20] sm:$0xf]
    %v93 = vld [vmem:[#allocation5 + $0x24] sm:$0xf]
    %v94 = vld [vmem:[#allocation5 + $0x28] sm:$0xf]
    %v95 = vld [vmem:[#allocation5 + $0x2c] sm:$0xf]
    %v96 = vld [vmem:[#allocation5 + $0x30] sm:$0xf]
    %v97 = vld [vmem:[#allocation5 + $0x34] sm:$0xf]
    %v98 = vld [vmem:[#allocation5 + $0x38] sm:$0xf]
    %v99 = vld [vmem:[#allocation5 + $0x3c] sm:$0xf]
    %v100 = vld [vmem:[%s2] sm:$0x1]
    %v102 = vlaneseq
    %v103 = vshrl.u32 %v102, 7
    %v104 = vsub.s32 0, %v103
    %v105 = vrot.slane %v100, %v104
    %v123 = vunpack.c.l.b16 %v84
    %v124 = vunpack.c.l.b16 %v85
    %v125 = vunpack.c.l.b16 %v86
    %v126 = vunpack.c.l.b16 %v87
    %v127 = vunpack.c.l.b16 %v88
    %v128 = vunpack.c.l.b16 %v89
    %v129 = vunpack.c.l.b16 %v90
    %v130 = vunpack.c.l.b16 %v91
    %v131 = vunpack.c.l.b16 %v92
    %v132 = vunpack.c.l.b16 %v93
    %v133 = vunpack.c.l.b16 %v94
    %v134 = vunpack.c.l.b16 %v95
    %v135 = vunpack.c.l.b16 %v96
    %v136 = vunpack.c.l.b16 %v97
    %v137 = vunpack.c.l.b16 %v98
    %v138 = vunpack.c.l.b16 %v99
    %v139 = vpack.c.b16 %v124, %v123
    %v140 = vpack.c.b16 %v126, %v125
    %v141 = vpack.c.b16 %v128, %v127
    %v142 = vpack.c.b16 %v130, %v129
    %v143 = vpack.c.b16 %v132, %v131
    %v144 = vpack.c.b16 %v134, %v133
    %v145 = vpack.c.b16 %v136, %v135
    %v146 = vpack.c.b16 %v138, %v137
    %155 = vmatprep.subr.bf16.mxu0 0
    %156 = vmatpush1.bf16.msra.mxu0 %v139
    %157 = vmatprep.subr.bf16.mxu0 0
    %158 = vmatpush1.bf16.msra.mxu0 %v140
    %159 = vmatprep.subr.bf16.mxu0 0
    %160 = vmatpush1.bf16.msra.mxu0 %v141
    %161 = vmatprep.subr.bf16.mxu0 0
    %162 = vmatpush1.bf16.msra.mxu0 %v142
    %163 = vmatprep.subr.bf16.mxu0 0
    %164 = vmatpush1.bf16.msra.mxu0 %v143
    %165 = vmatprep.subr.bf16.mxu0 0
    %166 = vmatpush1.bf16.msra.mxu0 %v144
    %167 = vmatprep.subr.bf16.mxu0 0
    %168 = vmatpush1.bf16.msra.mxu0 %v145
    %169 = vmatprep.subr.bf16.mxu0 0
    %170 = vmatpush1.bf16.msra.mxu0 %v146
    %171 = vmatprep.subr.bf16.mxu0 0
    %172 = vmatpush1.bf16.msra.mxu0 0
    %173 = vmatprep.subr.bf16.mxu0 0
    %174 = vmatpush1.bf16.msra.mxu0 0
    %175 = vmatprep.subr.bf16.mxu0 0
    %176 = vmatpush1.bf16.msra.mxu0 0
    %177 = vmatprep.subr.bf16.mxu0 0
    %178 = vmatpush1.bf16.msra.mxu0 0
    %179 = vmatprep.subr.bf16.mxu0 0
    %180 = vmatpush1.bf16.msra.mxu0 0
    %181 = vmatprep.subr.bf16.mxu0 0
    %182 = vmatpush1.bf16.msra.mxu0 0
    %183 = vmatprep.subr.bf16.mxu0 0
    %184 = vmatpush1.bf16.msra.mxu0 0
    %185 = vmatprep.subr.bf16.mxu0 0
    %186 = vmatpush1.bf16.msra.mxu0 0
    %187 = vmatprep.mubr.bf16.mxu0 0
    %188 = vmatmul.mubr.bf16.gmra.mrb[0].mxu0 %v83
    %v189 = vpop.f32.mrb[0].mxu0
    %v190 = vadd.f32 %v105, %v189
    %v191 = vpop.f32.mrb[0].mxu0
    %v192 = vpop.f32.mrb[0].mxu0
    %v193 = vpop.f32.mrb[0].mxu0
    %194 = vdwg.mxu0
    %v195 = vmax.f32 %v190, 0.0
    %v196 = vpack.c.bf16 %v195, %v195
    %v197 = vld [vmem:[#allocation7] sm:$0xf]
    %v198 = vld [vmem:[#allocation7 + $0x4] sm:$0xf]
    %v199 = vld [vmem:[#allocation7 + $0x8] sm:$0xf]
    %v200 = vld [vmem:[#allocation7 + $0xc] sm:$0xf]
    %v201 = vld [vmem:[#allocation7 + $0x10] sm:$0xf]
    %v202 = vld [vmem:[#allocation7 + $0x14] sm:$0xf]
    %v203 = vld [vmem:[#allocation7 + $0x18] sm:$0xf]
    %v204 = vld [vmem:[#allocation7 + $0x1c] sm:$0xf]
    %v205 = vld [vmem:[#allocation7 + $0x20] sm:$0xf]
    %v206 = vld [vmem:[#allocation7 + $0x24] sm:$0xf]
    %v207 = vld [vmem:[#allocation7 + $0x28] sm:$0xf]
    %v208 = vld [vmem:[#allocation7 + $0x2c] sm:$0xf]
    %v209 = vld [vmem:[#allocation7 + $0x30] sm:$0xf]
    %v210 = vld [vmem:[#allocation7 + $0x34] sm:$0xf]
    %v211 = vld [vmem:[#allocation7 + $0x38] sm:$0xf]
    %v212 = vld [vmem:[#allocation7 + $0x3c] sm:$0xf]
    %v213 = vld [vmem:[%s4] sm:$0x1]
    %v215 = vlaneseq
    %v216 = vshrl.u32 %v215, 7
    %v217 = vsub.s32 0, %v216
    %v218 = vrot.slane %v213, %v217
    %v236 = vunpack.c.l.b16 %v197
    %v237 = vunpack.c.l.b16 %v198
    %v238 = vunpack.c.l.b16 %v199
    %v239 = vunpack.c.l.b16 %v200
    %v240 = vunpack.c.l.b16 %v201
    %v241 = vunpack.c.l.b16 %v202
    %v242 = vunpack.c.l.b16 %v203
    %v243 = vunpack.c.l.b16 %v204
    %v244 = vunpack.c.l.b16 %v205
    %v245 = vunpack.c.l.b16 %v206
    %v246 = vunpack.c.l.b16 %v207
    %v247 = vunpack.c.l.b16 %v208
    %v248 = vunpack.c.l.b16 %v209
    %v249 = vunpack.c.l.b16 %v210
    %v250 = vunpack.c.l.b16 %v211
    %v251 = vunpack.c.l.b16 %v212
    %v252 = vpack.c.b16 %v237, %v236
    %v253 = vpack.c.b16 %v239, %v238
    %v254 = vpack.c.b16 %v241, %v240
    %v255 = vpack.c.b16 %v243, %v242
    %v256 = vpack.c.b16 %v245, %v244
    %v257 = vpack.c.b16 %v247, %v246
    %v258 = vpack.c.b16 %v249, %v248
    %v259 = vpack.c.b16 %v251, %v250
    %268 = vmatprep.subr.bf16.mxu0 0
    %269 = vmatpush1.bf16.msra.mxu0 %v252
    %270 = vmatprep.subr.bf16.mxu0 0
    %271 = vmatpush1.bf16.msra.mxu0 %v253
    %272 = vmatprep.subr.bf16.mxu0 0
    %273 = vmatpush1.bf16.msra.mxu0 %v254
    %274 = vmatprep.subr.bf16.mxu0 0
    %275 = vmatpush1.bf16.msra.mxu0 %v255
    %276 = vmatprep.subr.bf16.mxu0 0
    %277 = vmatpush1.bf16.msra.mxu0 %v256
    %278 = vmatprep.subr.bf16.mxu0 0
    %279 = vmatpush1.bf16.msra.mxu0 %v257
    %280 = vmatprep.subr.bf16.mxu0 0
    %281 = vmatpush1.bf16.msra.mxu0 %v258
    %282 = vmatprep.subr.bf16.mxu0 0
    %283 = vmatpush1.bf16.msra.mxu0 %v259
    %284 = vmatprep.subr.bf16.mxu0 0
    %285 = vmatpush1.bf16.msra.mxu0 0
    %286 = vmatprep.subr.bf16.mxu0 0
    %287 = vmatpush1.bf16.msra.mxu0 0
    %288 = vmatprep.subr.bf16.mxu0 0
    %289 = vmatpush1.bf16.msra.mxu0 0
    %290 = vmatprep.subr.bf16.mxu0 0
    %291 = vmatpush1.bf16.msra.mxu0 0
    %292 = vmatprep.subr.bf16.mxu0 0
    %293 = vmatpush1.bf16.msra.mxu0 0
    %294 = vmatprep.subr.bf16.mxu0 0
    %295 = vmatpush1.bf16.msra.mxu0 0
    %296 = vmatprep.subr.bf16.mxu0 0
    %297 = vmatpush1.bf16.msra.mxu0 0
    %298 = vmatprep.subr.bf16.mxu0 0
    %299 = vmatpush1.bf16.msra.mxu0 0
    %300 = vmatprep.mubr.bf16.mxu0 0
    %301 = vmatmul.mubr.bf16.gmra.mrb[0].mxu0 %v196
    %v302 = vpop.f32.mrb[0].mxu0
    %v303 = vadd.f32 %v218, %v302
    %v304 = vpop.f32.mrb[0].mxu0
    %v305 = vpop.f32.mrb[0].mxu0
    %v306 = vpop.f32.mrb[0].mxu0
    %307 = vdwg.mxu0
    %v308 = vmax.f32 %v303, 0.0
    %v309 = vpack.c.bf16 %v308, %v308
    %v310 = vld [vmem:[#allocation8] sm:$0xf]
    %v311 = vld [vmem:[#allocation8 + $0x4] sm:$0xf]
    %v312 = vld [vmem:[#allocation8 + $0x8] sm:$0xf]
    %v313 = vld [vmem:[#allocation8 + $0xc] sm:$0xf]
    %v314 = vld [vmem:[#allocation8 + $0x10] sm:$0xf]
    %v315 = vld [vmem:[#allocation8 + $0x14] sm:$0xf]
    %v316 = vld [vmem:[#allocation8 + $0x18] sm:$0xf]
    %v317 = vld [vmem:[#allocation8 + $0x1c] sm:$0xf]
    %v318 = vld [vmem:[#allocation8 + $0x20] sm:$0xf]
    %v319 = vld [vmem:[#allocation8 + $0x24] sm:$0xf]
    %v320 = vld [vmem:[#allocation8 + $0x28] sm:$0xf]
    %v321 = vld [vmem:[#allocation8 + $0x2c] sm:$0xf]
    %v322 = vld [vmem:[#allocation8 + $0x30] sm:$0xf]
    %v323 = vld [vmem:[#allocation8 + $0x34] sm:$0xf]
    %v324 = vld [vmem:[#allocation8 + $0x38] sm:$0xf]
    %v325 = vld [vmem:[#allocation8 + $0x3c] sm:$0xf]
    %v326 = vld [vmem:[%s6] sm:$0x1]
    %v328 = vlaneseq
    %v329 = vshrl.u32 %v328, 7
    %v330 = vsub.s32 0, %v329
    %v331 = vrot.slane %v326, %v330
    %v349 = vunpack.c.l.b16 %v310
    %v350 = vunpack.c.l.b16 %v311
    %v351 = vunpack.c.l.b16 %v312
    %v352 = vunpack.c.l.b16 %v313
    %v353 = vunpack.c.l.b16 %v314
    %v354 = vunpack.c.l.b16 %v315
    %v355 = vunpack.c.l.b16 %v316
    %v356 = vunpack.c.l.b16 %v317
    %v357 = vunpack.c.l.b16 %v318
    %v358 = vunpack.c.l.b16 %v319
    %v359 = vunpack.c.l.b16 %v320
    %v360 = vunpack.c.l.b16 %v321
    %v361 = vunpack.c.l.b16 %v322
    %v362 = vunpack.c.l.b16 %v323
    %v363 = vunpack.c.l.b16 %v324
    %v364 = vunpack.c.l.b16 %v325
    %v365 = vpack.c.b16 %v350, %v349
    %v366 = vpack.c.b16 %v352, %v351
    %v367 = vpack.c.b16 %v354, %v353
    %v368 = vpack.c.b16 %v356, %v355
    %v369 = vpack.c.b16 %v358, %v357
    %v370 = vpack.c.b16 %v360, %v359
    %v371 = vpack.c.b16 %v362, %v361
    %v372 = vpack.c.b16 %v364, %v363
    %381 = vmatprep.subr.bf16.mxu0 0
    %382 = vmatpush1.bf16.msra.mxu0 %v365
    %383 = vmatprep.subr.bf16.mxu0 0
    %384 = vmatpush1.bf16.msra.mxu0 %v366
    %385 = vmatprep.subr.bf16.mxu0 0
    %386 = vmatpush1.bf16.msra.mxu0 %v367
    %387 = vmatprep.subr.bf16.mxu0 0
    %388 = vmatpush1.bf16.msra.mxu0 %v368
    %389 = vmatprep.subr.bf16.mxu0 0
    %390 = vmatpush1.bf16.msra.mxu0 %v369
    %391 = vmatprep.subr.bf16.mxu0 0
    %392 = vmatpush1.bf16.msra.mxu0 %v370
    %393 = vmatprep.subr.bf16.mxu0 0
    %394 = vmatpush1.bf16.msra.mxu0 %v371
    %395 = vmatprep.subr.bf16.mxu0 0
    %396 = vmatpush1.bf16.msra.mxu0 %v372
    %397 = vmatprep.subr.bf16.mxu0 0
    %398 = vmatpush1.bf16.msra.mxu0 0
    %399 = vmatprep.subr.bf16.mxu0 0
    %400 = vmatpush1.bf16.msra.mxu0 0
    %401 = vmatprep.subr.bf16.mxu0 0
    %402 = vmatpush1.bf16.msra.mxu0 0
    %403 = vmatprep.subr.bf16.mxu0 0
    %404 = vmatpush1.bf16.msra.mxu0 0
    %405 = vmatprep.subr.bf16.mxu0 0
    %406 = vmatpush1.bf16.msra.mxu0 0
    %407 = vmatprep.subr.bf16.mxu0 0
    %408 = vmatpush1.bf16.msra.mxu0 0
    %409 = vmatprep.subr.bf16.mxu0 0
    %410 = vmatpush1.bf16.msra.mxu0 0
    %411 = vmatprep.subr.bf16.mxu0 0
    %412 = vmatpush1.bf16.msra.mxu0 0
    %413 = vmatprep.mubr.bf16.mxu0 0
    %414 = vmatmul.mubr.bf16.gmra.mrb[0].mxu0 %v309
    %v415 = vpop.f32.mrb[0].mxu0
    %v416 = vadd.f32 %v331, %v415
    %v417 = vpop.f32.mrb[0].mxu0
    %v418 = vpop.f32.mrb[0].mxu0
    %v419 = vpop.f32.mrb[0].mxu0
    %420 = vdwg.mxu0
    %421 = vst [vmem:[#allocation10] sm:$0xff] %v416
    %v422 = vlaneseq
    %v423 = vand.u32 %v422, 127
    %424 = vmax.xlane.f32.xlu0 %v416
    %v425 = vpop.xlane.xlu0 %424
    %vm426 = vcmp.eq.f32.partialorder %v416, %v425
    %v427 = vsel %vm426, %v423, 128
    %v428 = vand.u32 %v427, 65535
    %v429 = vshra.s32 %v427, 16
    %v430 = vcvt.s32.f32 %v428
    %v431 = vcvt.s32.f32 %v429
    %432 = vmin.xlane.f32.xlu0 %v431
    %v433 = vpop.xlane.xlu0 %432
    %vm434 = vcmp.eq.f32.partialorder %v431, %v433
    %v435 = vsel %vm434, %v430, inf
    %436 = vmin.xlane.f32.xlu0 %v435
    %v437 = vpop.xlane.xlu0 %436
    %v438 = vcvt.f32.s32 %v437
    %v439 = vcvt.f32.s32 %v433
    %v440 = vshll.u32 %v439, 16
    %v441 = vadd.s32 %v440, %v438
    %vm442 = vcmask 7168
    %443 = vst.msk [vmem:[%s8] sm:$0xff] %vm442, %v441
    // Predicated region
    $region46: #{tpu_custom_call.1} parent=1 // pred_check
      _
    $region47: #{tpu_custom_call.1} parent=1 // pred_check_branch
      %445 = sbr.rel (0) target = $region49
    $region48: #{tpu_custom_call.1} parent=1 // pred_region
      %s447 = ssub.s32 128, 128
      %448 = vsyncadd [#allocation4], %s447
      %s450 = sshll.u32 [#allocation10], 4
      %s451 = int_to_ptr.vmem [resolvable:$true] %s450
      %453 = dma.vmem_to_hbm [thread:$0]  %s451, 128, %s7, [#allocation4]
    $region49: #{tpu_custom_call.1} parent=1 // pred_fallthru
      _
    // Predicated region
    $region50: #{tpu_custom_call.1} parent=1 // pred_check
      _
    $region51: #{tpu_custom_call.1} parent=1 // pred_check_branch
      %455 = sbr.rel (0) target = $region53
    $region52: #{tpu_custom_call.1} parent=1 // pred_region
      _
    $region53: #{tpu_custom_call.1} parent=1 // pred_fallthru
      _
    // Predicated region
    $region54: #{tpu_custom_call.1} parent=1 // pred_check
      _
    $region55: #{tpu_custom_call.1} parent=1 // pred_check_branch
      %457 = sbr.rel (0) target = $region57
    $region56: #{tpu_custom_call.1} parent=1 // pred_region
      %458 = dma.done [#allocation4], 128
    $region57: #{tpu_custom_call.1} parent=1 // pred_fallthru
      _
    // Predicated region
    $region58: #{tpu_custom_call.1} parent=1 // pred_check
      _
    $region59: #{tpu_custom_call.1} parent=1 // pred_check_branch
      %460 = sbr.rel (0) target = $region61
    $region60: #{tpu_custom_call.1} parent=1 // pred_region
      _
    $region61: #{tpu_custom_call.1} parent=1 // pred_fallthru
      _
    %461 = vsyncpa [#allocation3], 1
    %462 = vsyncpa [#allocation6], 1
    %463 = vsyncpa [#allocation9], 1
    %464 = vsyncpa [#allocation4], 1

// kernel: tpu_custom_call.1
$region0: #{tpu_custom_call.1}
  #allocation0 [shape = 'u32[]', space=smem, size = 0x4, offset = 0x4, fixed_abs, tag = 'smem constant byte address 0x4 - core index']
  #allocation1 [shape = 'u32[144,128]{1,0:T(1,128)}', space=vmem, size = 0x12000, scoped, tag = 'internal scratch']
  %s0 = inlined_call_operand.hbm [shape: bf16[8,128], index: 0, kind: input, shape index: {}]
  %s1 = inlined_call_operand.hbm [shape: bf16[128,128], index: 1, kind: input, shape index: {}]
  %s2 = inlined_call_operand.vmem [shape: f32[1,128], index: 2, kind: input, shape index: {}]
  %s3 = inlined_call_operand.hbm [shape: bf16[128,128], index: 3, kind: input, shape index: {}]
  %s4 = inlined_call_operand.vmem [shape: f32[1,128], index: 4, kind: input, shape index: {}]
  %s5 = inlined_call_operand.hbm [shape: bf16[128,128], index: 5, kind: input, shape index: {}]
  %s6 = inlined_call_operand.vmem [shape: f32[1,128], index: 6, kind: input, shape index: {}]
  %s7 = inlined_call_operand.hbm [shape: f32[8,128], index: 7, kind: output, shape index: {0}]
  %s8 = inlined_call_operand.vmem [shape: s32[8,1], index: 8, kind: output, shape index: {1}]
  %9 = xla_tuple %s7, %s8
  %s10 = sld [smem:[#allocation0]]
  $region62: #{tpu_custom_call.1} parent=0
    _
  %s12 = ssub.s32 1, %s10
  %s13 = scalar_select 0, %s12, %s10
  $region1: #{tpu_custom_call.1} parent=0
    #allocation2 [shape = 'u8[2048]{0}', space=vmem, size = 0x800, scoped, tag = 'input window, operand 0, single buffered']
    #allocation3 [shape = 's32[1]{0}', space=sflag, size = 0x4, scoped, tag = 'scoped memory for tpu_custom_call.1']
    #allocation4 [shape = 's32[1]{0}', space=sflag, size = 0x4, scoped, tag = 'scoped memory for tpu_custom_call.1']
    #allocation5 [shape = 'u8[32768]{0}', space=vmem, size = 0x8000, scoped, tag = 'input window, operand 1, single buffered']
    #allocation6 [shape = 's32[1]{0}', space=sflag, size = 0x4, scoped, tag = 'scoped memory for tpu_custom_call.1']
    #allocation7 [shape = 'u8[32768]{0}', space=vmem, size = 0x8000, scoped, tag = 'input window, operand 3, single buffered']
    #allocation8 [shape = 'u8[32768]{0}', space=vmem, size = 0x8000, scoped, tag = 'input window, operand 5, single buffered']
    #allocation9 [shape = 's32[1]{0}', space=sflag, size = 0x4, scoped, tag = 'scoped memory for tpu_custom_call.1']
    #allocation10 [shape = 'u8[4096]{0}', space=vmem, size = 0x1000, scoped, tag = 'output window, operand 0, single buffered']
    %14 = vsyncpa [#allocation3], 0
    %15 = vsyncpa [#allocation6], 0
    %16 = vsyncpa [#allocation9], 0
    %17 = vsyncpa [#allocation4], 0
    // Predicated region
    $region2: #{tpu_custom_call.1} parent=1 // pred_check
      _
    $region3: #{tpu_custom_call.1} parent=1 // pred_check_branch
      %19 = sbr.rel (0) target = $region5
    $region4: #{tpu_custom_call.1} parent=1 // pred_region
      %s21 = ssub.s32 64, 64
      %22 = vsyncadd [#allocation3], %s21
      %s24 = sshll.u32 [#allocation2], 4
      %s25 = int_to_ptr.vmem [resolvable:$true] %s24
      %27 = dma.hbm_to_vmem [thread:$0]  %s0, 64, %s25, [#allocation3]
    $region5: #{tpu_custom_call.1} parent=1 // pred_fallthru
      _
    // Predicated region
    $region6: #{tpu_custom_call.1} parent=1 // pred_check
      _
    $region7: #{tpu_custom_call.1} parent=1 // pred_check_branch
      %29 = sbr.rel (0) target = $region9
    $region8: #{tpu_custom_call.1} parent=1 // pred_region
      %s31 = ssub.s32 1024, 1024
      %32 = vsyncadd [#allocation6], %s31
      %s33 = sshll.u32 [#allocation5], 4
      %s34 = int_to_ptr.vmem [resolvable:$true] %s33
      %39 = dma.hbm_to_vmem [thread:$0]  %s1, 1024, %s34, [#allocation6], 64, 64, 4
    $region9: #{tpu_custom_call.1} parent=1 // pred_fallthru
      _
    // Predicated region
    $region10: #{tpu_custom_call.1} parent=1 // pred_check
      _
    $region11: #{tpu_custom_call.1} parent=1 // pred_check_branch
      %41 = sbr.rel (0) target = $region13
    $region12: #{tpu_custom_call.1} parent=1 // pred_region
      _
    $region13: #{tpu_custom_call.1} parent=1 // pred_fallthru
      _
    // Predicated region
    $region14: #{tpu_custom_call.1} parent=1 // pred_check
      _
    $region15: #{tpu_custom_call.1} parent=1 // pred_check_branch
      %43 = sbr.rel (0) target = $region17
    $region16: #{tpu_custom_call.1} parent=1 // pred_region
      %s45 = ssub.s32 1024, 1024
      %46 = vsyncadd [#allocation6], %s45
      %s47 = sshll.u32 [#allocation7], 4
      %s48 = int_to_ptr.vmem [resolvable:$true] %s47
      %53 = dma.hbm_to_vmem [thread:$0]  %s3, 1024, %s48, [#allocation6], 64, 64, 4
    $region17: #{tpu_custom_call.1} parent=1 // pred_fallthru
      _
    // Predicated region
    $region18: #{tpu_custom_call.1} parent=1 // pred_check
      _
    $region19: #{tpu_custom_call.1} parent=1 // pred_check_branch
      %55 = sbr.rel (0) target = $region21
    $region20: #{tpu_custom_call.1} parent=1 // pred_region
      _
    $region21: #{tpu_custom_call.1} parent=1 // pred_fallthru
      _
    // Predicated region
    $region22: #{tpu_custom_call.1} parent=1 // pred_check
      _
    $region23: #{tpu_custom_call.1} parent=1 // pred_check_branch
      %57 = sbr.rel (0) target = $region25
    $region24: #{tpu_custom_call.1} parent=1 // pred_region
      %s59 = ssub.s32 1024, 1024
      %60 = vsyncadd [#allocation9], %s59
      %s61 = sshll.u32 [#allocation8], 4
      %s62 = int_to_ptr.vmem [resolvable:$true] %s61
      %67 = dma.hbm_to_vmem [thread:$0]  %s5, 1024, %s62, [#allocation9], 64, 64, 4
    $region25: #{tpu_custom_call.1} parent=1 // pred_fallthru
      _
    // Predicated region
    $region26: #{tpu_custom_call.1} parent=1 // pred_check
      _
    $region27: #{tpu_custom_call.1} parent=1 // pred_check_branch
      %69 = sbr.rel (0) target = $region29
    $region28: #{tpu_custom_call.1} parent=1 // pred_region
      _
    $region29: #{tpu_custom_call.1} parent=1 // pred_fallthru
      _
    // Predicated region
    $region30: #{tpu_custom_call.1} parent=1 // pred_check
      _
    $region31: #{tpu_custom_call.1} parent=1 // pred_check_branch
      %71 = sbr.rel (0) target = $region33
    $region32: #{tpu_custom_call.1} parent=1 // pred_region
      %72 = dma.done [#allocation3], 64
    $region33: #{tpu_custom_call.1} parent=1 // pred_fallthru
      _
    // Predicated region
    $region34: #{tpu_custom_call.1} parent=1 // pred_check
      _
    $region35: #{tpu_custom_call.1} parent=1 // pred_check_branch
      %74 = sbr.rel (0) target = $region37
    $region36: #{tpu_custom_call.1} parent=1 // pred_region
      %75 = dma.done [#allocation6], 1024
    $region37: #{tpu_custom_call.1} parent=1 // pred_fallthru
      _
    // Predicated region
    $region38: #{tpu_custom_call.1} parent=1 // pred_check
      _
    $region39: #{tpu_custom_call.1} parent=1 // pred_check_branch
      %77 = sbr.rel (0) target = $region41
    $region40: #{tpu_custom_call.1} parent=1 // pred_region
      %78 = dma.done [#allocation6], 1024
    $region41: #{tpu_custom_call.1} parent=1 // pred_fallthru
      _
    // Predicated region
    $region42: #{tpu_custom_call.1} parent=1 // pred_check
      _
    $region43: #{tpu_custom_call.1} parent=1 // pred_check_branch
      %80 = sbr.rel (0) target = $region45
    $region44: #{tpu_custom_call.1} parent=1 // pred_region
      %81 = dma.done [#allocation9], 1024
    $region45: #{tpu_custom_call.1} parent=1 // pred_fallthru
      _
    %v83 = vld [vmem:[#allocation2] sm:$0xf]
    %v84 = vld [vmem:[#allocation5] sm:$0xf]
    %v85 = vld [vmem:[#allocation5 + $0x4] sm:$0xf]
    %v86 = vld [vmem:[#allocation5 + $0x8] sm:$0xf]
    %v87 = vld [vmem:[#allocation5 + $0xc] sm:$0xf]
    %v88 = vld [vmem:[#allocation5 + $0x10] sm:$0xf]
    %v89 = vld [vmem:[#allocation5 + $0x14] sm:$0xf]
    %v90 = vld [vmem:[#allocation5 + $0x18] sm:$0xf]
    %v91 = vld [vmem:[#allocation5 + $0x1c] sm:$0xf]
    %v92 = vld [vmem:[#allocation5 + $0x20] sm:$0xf]
    %v93 = vld [vmem:[#allocation5 + $0x24] sm:$0xf]
    %v94 = vld [vmem:[#allocation5 + $0x28] sm:$0xf]
    %v95 = vld [vmem:[#allocation5 + $0x2c] sm:$0xf]
    %v96 = vld [vmem:[#allocation5 + $0x30] sm:$0xf]
    %v97 = vld [vmem:[#allocation5 + $0x34] sm:$0xf]
    %v98 = vld [vmem:[#allocation5 + $0x38] sm:$0xf]
    %v99 = vld [vmem:[#allocation5 + $0x3c] sm:$0xf]
    %v100 = vld [vmem:[%s2] sm:$0x1]
    %v102 = vlaneseq
    %v103 = vshrl.u32 %v102, 7
    %v104 = vsub.s32 0, %v103
    %v105 = vrot.slane %v100, %v104
    %v123 = vunpack.c.l.b16 %v84
    %v124 = vunpack.c.l.b16 %v85
    %v125 = vunpack.c.l.b16 %v86
    %v126 = vunpack.c.l.b16 %v87
    %v127 = vunpack.c.l.b16 %v88
    %v128 = vunpack.c.l.b16 %v89
    %v129 = vunpack.c.l.b16 %v90
    %v130 = vunpack.c.l.b16 %v91
    %v131 = vunpack.c.l.b16 %v92
    %v132 = vunpack.c.l.b16 %v93
    %v133 = vunpack.c.l.b16 %v94
    %v134 = vunpack.c.l.b16 %v95
    %v135 = vunpack.c.l.b16 %v96
    %v136 = vunpack.c.l.b16 %v97
    %v137 = vunpack.c.l.b16 %v98
    %v138 = vunpack.c.l.b16 %v99
    %v139 = vpack.c.b16 %v124, %v123
    %v140 = vpack.c.b16 %v126, %v125
    %v141 = vpack.c.b16 %v128, %v127
    %v142 = vpack.c.b16 %v130, %v129
    %v143 = vpack.c.b16 %v132, %v131
    %v144 = vpack.c.b16 %v134, %v133
    %v145 = vpack.c.b16 %v136, %v135
    %v146 = vpack.c.b16 %v138, %v137
    %155 = vmatprep.subr.bf16.mxu0 0
    %156 = vmatpush1.bf16.msra.mxu0 %v139
    %157 = vmatprep.subr.bf16.mxu0 0
    %158 = vmatpush1.bf16.msra.mxu0 %v140
    %159 = vmatprep.subr.bf16.mxu0 0
    %160 = vmatpush1.bf16.msra.mxu0 %v141
    %161 = vmatprep.subr.bf16.mxu0 0
    %162 = vmatpush1.bf16.msra.mxu0 %v142
    %163 = vmatprep.subr.bf16.mxu0 0
    %164 = vmatpush1.bf16.msra.mxu0 %v143
    %165 = vmatprep.subr.bf16.mxu0 0
    %166 = vmatpush1.bf16.msra.mxu0 %v144
    %167 = vmatprep.subr.bf16.mxu0 0
    %168 = vmatpush1.bf16.msra.mxu0 %v145
    %169 = vmatprep.subr.bf16.mxu0 0
    %170 = vmatpush1.bf16.msra.mxu0 %v146
    %171 = vmatprep.subr.bf16.mxu0 0
    %172 = vmatpush1.bf16.msra.mxu0 0
    %173 = vmatprep.subr.bf16.mxu0 0
    %174 = vmatpush1.bf16.msra.mxu0 0
    %175 = vmatprep.subr.bf16.mxu0 0
    %176 = vmatpush1.bf16.msra.mxu0 0
    %177 = vmatprep.subr.bf16.mxu0 0
    %178 = vmatpush1.bf16.msra.mxu0 0
    %179 = vmatprep.subr.bf16.mxu0 0
    %180 = vmatpush1.bf16.msra.mxu0 0
    %181 = vmatprep.subr.bf16.mxu0 0
    %182 = vmatpush1.bf16.msra.mxu0 0
    %183 = vmatprep.subr.bf16.mxu0 0
    %184 = vmatpush1.bf16.msra.mxu0 0
    %185 = vmatprep.subr.bf16.mxu0 0
    %186 = vmatpush1.bf16.msra.mxu0 0
    %187 = vmatprep.mubr.bf16.mxu0 0
    %188 = vmatmul.mubr.bf16.gmra.mrb[0].mxu0 %v83
    %v189 = vpop.f32.mrb[0].mxu0
    %v190 = vadd.f32 %v105, %v189
    %v191 = vpop.f32.mrb[0].mxu0
    %v192 = vpop.f32.mrb[0].mxu0
    %v193 = vpop.f32.mrb[0].mxu0
    %194 = vdwg.mxu0
    %v195 = vmax.f32 %v190, 0.0
    %v196 = vpack.c.bf16 %v195, %v195
    %v197 = vld [vmem:[#allocation7] sm:$0xf]
    %v198 = vld [vmem:[#allocation7 + $0x4] sm:$0xf]
    %v199 = vld [vmem:[#allocation7 + $0x8] sm:$0xf]
    %v200 = vld [vmem:[#allocation7 + $0xc] sm:$0xf]
    %v201 = vld [vmem:[#allocation7 + $0x10] sm:$0xf]
    %v202 = vld [vmem:[#allocation7 + $0x14] sm:$0xf]
    %v203 = vld [vmem:[#allocation7 + $0x18] sm:$0xf]
    %v204 = vld [vmem:[#allocation7 + $0x1c] sm:$0xf]
    %v205 = vld [vmem:[#allocation7 + $0x20] sm:$0xf]
    %v206 = vld [vmem:[#allocation7 + $0x24] sm:$0xf]
    %v207 = vld [vmem:[#allocation7 + $0x28] sm:$0xf]
    %v208 = vld [vmem:[#allocation7 + $0x2c] sm:$0xf]
    %v209 = vld [vmem:[#allocation7 + $0x30] sm:$0xf]
    %v210 = vld [vmem:[#allocation7 + $0x34] sm:$0xf]
    %v211 = vld [vmem:[#allocation7 + $0x38] sm:$0xf]
    %v212 = vld [vmem:[#allocation7 + $0x3c] sm:$0xf]
    %v213 = vld [vmem:[%s4] sm:$0x1]
    %v215 = vlaneseq
    %v216 = vshrl.u32 %v215, 7
    %v217 = vsub.s32 0, %v216
    %v218 = vrot.slane %v213, %v217
    %v236 = vunpack.c.l.b16 %v197
    %v237 = vunpack.c.l.b16 %v198
    %v238 = vunpack.c.l.b16 %v199
    %v239 = vunpack.c.l.b16 %v200
    %v240 = vunpack.c.l.b16 %v201
    %v241 = vunpack.c.l.b16 %v202
    %v242 = vunpack.c.l.b16 %v203
    %v243 = vunpack.c.l.b16 %v204
    %v244 = vunpack.c.l.b16 %v205
    %v245 = vunpack.c.l.b16 %v206
    %v246 = vunpack.c.l.b16 %v207
    %v247 = vunpack.c.l.b16 %v208
    %v248 = vunpack.c.l.b16 %v209
    %v249 = vunpack.c.l.b16 %v210
    %v250 = vunpack.c.l.b16 %v211
    %v251 = vunpack.c.l.b16 %v212
    %v252 = vpack.c.b16 %v237, %v236
    %v253 = vpack.c.b16 %v239, %v238
    %v254 = vpack.c.b16 %v241, %v240
    %v255 = vpack.c.b16 %v243, %v242
    %v256 = vpack.c.b16 %v245, %v244
    %v257 = vpack.c.b16 %v247, %v246
    %v258 = vpack.c.b16 %v249, %v248
    %v259 = vpack.c.b16 %v251, %v250
    %268 = vmatprep.subr.bf16.mxu0 0
    %269 = vmatpush1.bf16.msra.mxu0 %v252
    %270 = vmatprep.subr.bf16.mxu0 0
    %271 = vmatpush1.bf16.msra.mxu0 %v253
    %272 = vmatprep.subr.bf16.mxu0 0
    %273 = vmatpush1.bf16.msra.mxu0 %v254
    %274 = vmatprep.subr.bf16.mxu0 0
    %275 = vmatpush1.bf16.msra.mxu0 %v255
    %276 = vmatprep.subr.bf16.mxu0 0
    %277 = vmatpush1.bf16.msra.mxu0 %v256
    %278 = vmatprep.subr.bf16.mxu0 0
    %279 = vmatpush1.bf16.msra.mxu0 %v257
    %280 = vmatprep.subr.bf16.mxu0 0
    %281 = vmatpush1.bf16.msra.mxu0 %v258
    %282 = vmatprep.subr.bf16.mxu0 0
    %283 = vmatpush1.bf16.msra.mxu0 %v259
    %284 = vmatprep.subr.bf16.mxu0 0
    %285 = vmatpush1.bf16.msra.mxu0 0
    %286 = vmatprep.subr.bf16.mxu0 0
    %287 = vmatpush1.bf16.msra.mxu0 0
    %288 = vmatprep.subr.bf16.mxu0 0
    %289 = vmatpush1.bf16.msra.mxu0 0
    %290 = vmatprep.subr.bf16.mxu0 0
    %291 = vmatpush1.bf16.msra.mxu0 0
    %292 = vmatprep.subr.bf16.mxu0 0
    %293 = vmatpush1.bf16.msra.mxu0 0
    %294 = vmatprep.subr.bf16.mxu0 0
    %295 = vmatpush1.bf16.msra.mxu0 0
    %296 = vmatprep.subr.bf16.mxu0 0
    %297 = vmatpush1.bf16.msra.mxu0 0
    %298 = vmatprep.subr.bf16.mxu0 0
    %299 = vmatpush1.bf16.msra.mxu0 0
    %300 = vmatprep.mubr.bf16.mxu0 0
    %301 = vmatmul.mubr.bf16.gmra.mrb[0].mxu0 %v196
    %v302 = vpop.f32.mrb[0].mxu0
    %v303 = vadd.f32 %v218, %v302
    %v304 = vpop.f32.mrb[0].mxu0
    %v305 = vpop.f32.mrb[0].mxu0
    %v306 = vpop.f32.mrb[0].mxu0
    %307 = vdwg.mxu0
    %v308 = vmax.f32 %v303, 0.0
    %v309 = vpack.c.bf16 %v308, %v308
    %v310 = vld [vmem:[#allocation8] sm:$0xf]
    %v311 = vld [vmem:[#allocation8 + $0x4] sm:$0xf]
    %v312 = vld [vmem:[#allocation8 + $0x8] sm:$0xf]
    %v313 = vld [vmem:[#allocation8 + $0xc] sm:$0xf]
    %v314 = vld [vmem:[#allocation8 + $0x10] sm:$0xf]
    %v315 = vld [vmem:[#allocation8 + $0x14] sm:$0xf]
    %v316 = vld [vmem:[#allocation8 + $0x18] sm:$0xf]
    %v317 = vld [vmem:[#allocation8 + $0x1c] sm:$0xf]
    %v318 = vld [vmem:[#allocation8 + $0x20] sm:$0xf]
    %v319 = vld [vmem:[#allocation8 + $0x24] sm:$0xf]
    %v320 = vld [vmem:[#allocation8 + $0x28] sm:$0xf]
    %v321 = vld [vmem:[#allocation8 + $0x2c] sm:$0xf]
    %v322 = vld [vmem:[#allocation8 + $0x30] sm:$0xf]
    %v323 = vld [vmem:[#allocation8 + $0x34] sm:$0xf]
    %v324 = vld [vmem:[#allocation8 + $0x38] sm:$0xf]
    %v325 = vld [vmem:[#allocation8 + $0x3c] sm:$0xf]
    %v326 = vld [vmem:[%s6] sm:$0x1]
    %v328 = vlaneseq
    %v329 = vshrl.u32 %v328, 7
    %v330 = vsub.s32 0, %v329
    %v331 = vrot.slane %v326, %v330
    %v349 = vunpack.c.l.b16 %v310
    %v350 = vunpack.c.l.b16 %v311
    %v351 = vunpack.c.l.b16 %v312
    %v352 = vunpack.c.l.b16 %v313
    %v353 = vunpack.c.l.b16 %v314
    %v354 = vunpack.c.l.b16 %v315
    %v355 = vunpack.c.l.b16 %v316
    %v356 = vunpack.c.l.b16 %v317
    %v357 = vunpack.c.l.b16 %v318
    %v358 = vunpack.c.l.b16 %v319
    %v359 = vunpack.c.l.b16 %v320
    %v360 = vunpack.c.l.b16 %v321
    %v361 = vunpack.c.l.b16 %v322
    %v362 = vunpack.c.l.b16 %v323
    %v363 = vunpack.c.l.b16 %v324
    %v364 = vunpack.c.l.b16 %v325
    %v365 = vpack.c.b16 %v350, %v349
    %v366 = vpack.c.b16 %v352, %v351
    %v367 = vpack.c.b16 %v354, %v353
    %v368 = vpack.c.b16 %v356, %v355
    %v369 = vpack.c.b16 %v358, %v357
    %v370 = vpack.c.b16 %v360, %v359
    %v371 = vpack.c.b16 %v362, %v361
    %v372 = vpack.c.b16 %v364, %v363
    %381 = vmatprep.subr.bf16.mxu0 0
    %382 = vmatpush1.bf16.msra.mxu0 %v365
    %383 = vmatprep.subr.bf16.mxu0 0
    %384 = vmatpush1.bf16.msra.mxu0 %v366
    %385 = vmatprep.subr.bf16.mxu0 0
    %386 = vmatpush1.bf16.msra.mxu0 %v367
    %387 = vmatprep.subr.bf16.mxu0 0
    %388 = vmatpush1.bf16.msra.mxu0 %v368
    %389 = vmatprep.subr.bf16.mxu0 0
    %390 = vmatpush1.bf16.msra.mxu0 %v369
    %391 = vmatprep.subr.bf16.mxu0 0
    %392 = vmatpush1.bf16.msra.mxu0 %v370
    %393 = vmatprep.subr.bf16.mxu0 0
    %394 = vmatpush1.bf16.msra.mxu0 %v371
    %395 = vmatprep.subr.bf16.mxu0 0
    %396 = vmatpush1.bf16.msra.mxu0 %v372
    %397 = vmatprep.subr.bf16.mxu0 0
    %398 = vmatpush1.bf16.msra.mxu0 0
    %399 = vmatprep.subr.bf16.mxu0 0
    %400 = vmatpush1.bf16.msra.mxu0 0
    %401 = vmatprep.subr.bf16.mxu0 0
    %402 = vmatpush1.bf16.msra.mxu0 0
    %403 = vmatprep.subr.bf16.mxu0 0
    %404 = vmatpush1.bf16.msra.mxu0 0
    %405 = vmatprep.subr.bf16.mxu0 0
    %406 = vmatpush1.bf16.msra.mxu0 0
    %407 = vmatprep.subr.bf16.mxu0 0
    %408 = vmatpush1.bf16.msra.mxu0 0
    %409 = vmatprep.subr.bf16.mxu0 0
    %410 = vmatpush1.bf16.msra.mxu0 0
    %411 = vmatprep.subr.bf16.mxu0 0
    %412 = vmatpush1.bf16.msra.mxu0 0
    %413 = vmatprep.mubr.bf16.mxu0 0
    %414 = vmatmul.mubr.bf16.gmra.mrb[0].mxu0 %v309
    %v415 = vpop.f32.mrb[0].mxu0
    %v416 = vadd.f32 %v331, %v415
    %v417 = vpop.f32.mrb[0].mxu0
    %v418 = vpop.f32.mrb[0].mxu0
    %v419 = vpop.f32.mrb[0].mxu0
    %420 = vdwg.mxu0
    %421 = vst [vmem:[#allocation10] sm:$0xff] %v416
    %v422 = vlaneseq
    %v423 = vand.u32 %v422, 127
    %424 = vmax.xlane.f32.xlu0 %v416
    %v425 = vpop.xlane.xlu0 %424
    %vm426 = vcmp.eq.f32.partialorder %v416, %v425
    %v427 = vsel %vm426, %v423, 128
    %v428 = vand.u32 %v427, 65535
    %v429 = vshra.s32 %v427, 16
    %v430 = vcvt.s32.f32 %v428
    %v431 = vcvt.s32.f32 %v429
    %432 = vmin.xlane.f32.xlu0 %v431
    %v433 = vpop.xlane.xlu0 %432
    %vm434 = vcmp.eq.f32.partialorder %v431, %v433
    %v435 = vsel %vm434, %v430, inf
    %436 = vmin.xlane.f32.xlu0 %v435
    %v437 = vpop.xlane.xlu0 %436
    %v438 = vcvt.f32.s32 %v437
    %v439 = vcvt.f32.s32 %v433
    %v440 = vshll.u32 %v439, 16
    %v441 = vadd.s32 %v440, %v438
    %vm442 = vcmask 7168
    %443 = vst.msk [vmem:[%s8] sm:$0xff] %vm442, %v441
    // Predicated region
    $region46: #{tpu_custom_call.1} parent=1 // pred_check
      _
    $region47: #{tpu_custom_call.1} parent=1 // pred_check_branch
      %445 = sbr.rel (0) target = $region49
    $region48: #{tpu_custom_call.1} parent=1 // pred_region
      %s447 = ssub.s32 128, 128
      %448 = vsyncadd [#allocation4], %s447
      %s450 = sshll.u32 [#allocation10], 4
      %s451 = int_to_ptr.vmem [resolvable:$true] %s450
      %453 = dma.vmem_to_hbm [thread:$0]  %s451, 128, %s7, [#allocation4]
    $region49: #{tpu_custom_call.1} parent=1 // pred_fallthru
      _
    // Predicated region
    $region50: #{tpu_custom_call.1} parent=1 // pred_check
      _
    $region51: #{tpu_custom_call.1} parent=1 // pred_check_branch
      %455 = sbr.rel (0) target = $region53
    $region52: #{tpu_custom_call.1} parent=1 // pred_region
      _
    $region53: #{tpu_custom_call.1} parent=1 // pred_fallthru
      _
    // Predicated region
    $region54: #{tpu_custom_call.1} parent=1 // pred_check
      _
    $region55: #{tpu_custom_call.1} parent=1 // pred_check_branch
      %457 = sbr.rel (0) target = $region57
    $region56: #{tpu_custom_call.1} parent=1 // pred_region
      %458 = dma.done [#allocation4], 128
    $region57: #{tpu_custom_call.1} parent=1 // pred_fallthru
      _
    // Predicated region
    $region58: #{tpu_custom_call.1} parent=1 // pred_check
      _
    $region59: #{tpu_custom_call.1} parent=1 // pred_check_branch
      %460 = sbr.rel (0) target = $region61
    $region60: #{tpu_custom_call.1} parent=1 // pred_region
      _
    $region61: #{tpu_custom_call.1} parent=1 // pred_fallthru
      _
    %461 = vsyncpa [#allocation3], 1
    %462 = vsyncpa [#allocation6], 1
    %463 = vsyncpa [#allocation9], 1
    %464 = vsyncpa [#allocation4], 1

</llo_original>
